<compile_context>
chip_gen: v7x
topology: tpu7x:2x2x1
jax: 0.10.0
libtpu: 0.0.40
codegen_flags: <defaults>
</compile_context>

<pallas_src>
import functools

import jax
import jax.numpy as jnp
from jax import lax
from jax.experimental import pallas as pl
from jax.experimental.pallas import tpu as pltpu


def _multimax_kernel(x_ref, o_ref, *, k: int):
    """Iterative top-k extraction along the last axis.

    x_ref : (R, N)      block in VMEM
    o_ref : (R, K_pad)  block in VMEM, K_pad = round_up(k, 128) (lane-dense)
    """
    # bf16 stays native (bf16 VALU on v6e/v7x halves the working set);
    # everything else is computed in f32.
    in_dtype = x_ref.dtype
    compute_dtype = in_dtype if in_dtype in (jnp.float32, jnp.bfloat16) else jnp.float32

    x = x_ref[...].astype(compute_dtype)
    rows, n = x.shape
    k_pad = o_ref.shape[-1]

    # lane index of every element (for first-occurrence knockout)
    col = lax.broadcasted_iota(jnp.int32, (rows, n), dimension=1)
    # lane index of the output slot
    out_col = lax.broadcasted_iota(jnp.int32, (rows, k_pad), dimension=1)

    neg_inf = jnp.asarray(-jnp.inf, dtype=compute_dtype)
    out = jnp.zeros((rows, k_pad), dtype=o_ref.dtype)

    # k is small (typical multimax pooling); unrolled loop, 2 cross-lane
    # reductions per pass.  NaN inputs are an unhandled edge case (they would
    # be emitted k times), matching the original kernel's behavior.
    for j in range(k):
        m = jnp.max(x, axis=-1, keepdims=True)                      # (R, 1)
        out = jnp.where(out_col == j, m.astype(o_ref.dtype), out)   # lane-dense slot write
        if j + 1 < k:
            # first occurrence of the row max (ties emitted the right number
            # of times, as argsort would), knock out exactly that position.
            idx = jnp.min(jnp.where(x == m, col, n), axis=-1, keepdims=True)
            x = jnp.where(col == idx, neg_inf, x)

    o_ref[...] = out


def global_multimax_pool1d(x: jax.Array, outputs: int = 1) -> jax.Array:
    """Top-`outputs` values of `x` along the last axis, descending.

    x: (B, C, N)  ->  (B, C, outputs)
    """
    b, c, n = x.shape
    k = int(outputs)
    assert 1 <= k <= n, "outputs must be in [1, N]"

    rows = b * c
    x2 = x.reshape(rows, n)

    # Lane-dense output width: multiple of 128 so stores are unmasked vst.
    k_pad = ((k + 127) // 128) * 128

    # Row tile: multiple of 8 sublanes, sized so one (double-buffered) input
    # tile stays around ~4 MiB -> fits scoped VMEM on v5e (16 MiB default
    # raised below), v6e (32 MiB) and v7x (64 MiB physical).
    tile_budget_bytes = 4 * 1024 * 1024
    bytes_per_row = max(n * x.dtype.itemsize, 1)
    r_tile = (tile_budget_bytes // bytes_per_row // 8) * 8
    r_tile = max(8, min(1024, r_tile))
    rows_aligned = ((rows + 7) // 8) * 8
    r_tile = min(r_tile, rows_aligned)

    rows_pad = ((rows + r_tile - 1) // r_tile) * r_tile
    if rows_pad != rows:
        x2 = jnp.pad(x2, ((0, rows_pad - rows), (0, 0)))

    grid = (rows_pad // r_tile,)
    kernel = functools.partial(_multimax_kernel, k=k)

    cost = pl.CostEstimate(
        flops=2 * k * rows_pad * n,                      # compares per pass
        transcendentals=0,
        bytes_accessed=rows_pad * n * x.dtype.itemsize
        + rows_pad * k_pad * x.dtype.itemsize,
    )

    out2 = pl.pallas_call(
        kernel,
        out_shape=jax.ShapeDtypeStruct((rows_pad, k_pad), x.dtype),
        grid=grid,
        in_specs=[pl.BlockSpec((r_tile, n), lambda i: (i, 0))],
        out_specs=pl.BlockSpec((r_tile, k_pad), lambda i: (i, 0)),
        compiler_params=pltpu.CompilerParams(
            dimension_semantics=("parallel",),
            vmem_limit_bytes=32 * 1024 * 1024,
        ),
        cost_estimate=cost,
    )(x2)

    return out2[:rows, :k].reshape(b, c, k)


def _reference(x: jax.Array, outputs: int) -> jax.Array:
    # pure-JAX reference mirroring the PyTorch forward
    srt = jnp.flip(jnp.sort(x, axis=-1), axis=-1)
    return srt[..., :outputs]


if __name__ == "__main__":
    key = jax.random.PRNGKey(0)

    # Case 1: float32, the module's nominal small shape.
    B, C, N, K = 2, 4, 16, 4
    x = jax.random.normal(key, (B, C, N), dtype=jnp.float32)
    out = jax.block_until_ready(global_multimax_pool1d(x, outputs=K))
    ref = _reference(x, K)
    assert out.shape == (B, C, K), out.shape
    assert jnp.allclose(out, ref, atol=1e-6), "f32 mismatch vs reference"

    # Case 2: bf16 native path + row padding (rows = 15 -> padded).
    B2, C2, N2, K2 = 3, 5, 40, 3
    x2 = jax.random.normal(jax.random.PRNGKey(1), (B2, C2, N2), dtype=jnp.bfloat16)
    out2 = jax.block_until_ready(global_multimax_pool1d(x2, outputs=K2))
    ref2 = _reference(x2, K2)
    assert out2.shape == (B2, C2, K2), out2.shape
    assert jnp.array_equal(out2, ref2), "bf16 mismatch vs reference"

    print("KERNEL_OK")
</pallas_src>

<mosaic_0001>
module attributes {stable_mosaic.version = 11 : i64} {
  func.func @_multimax_kernel(%arg0: i32, %arg1: memref<8x16xf32, #tpu.memory_space<vmem>>, %arg2: memref<8x128xf32, #tpu.memory_space<vmem>>) attributes {dimension_semantics = [#tpu.dimension_semantics<parallel>], iteration_bounds = array<i64: 1>, scalar_prefetch = 0 : i64, scratch_operands = 0 : i64, tpu.core_type = #tpu.core_type<tc>, window_params = [{transform_indices = @transform_0, window_bounds = array<i64: 8, 16>}, {transform_indices = @transform_1, window_bounds = array<i64: 8, 128>}]} {
    %c0 = arith.constant 0 : index
    %c0_0 = arith.constant 0 : index
    %0 = vector.load %arg1[%c0, %c0_0] : memref<8x16xf32, #tpu.memory_space<vmem>>, vector<8x16xf32>
    %1 = tpu.iota {dimensions = array<i32: 1>} : vector<8x16xi32>
    %2 = tpu.iota {dimensions = array<i32: 1>} : vector<8x128xi32>
    %cst = arith.constant 0.000000e+00 : f32
    %3 = vector.broadcast %cst : f32 to vector<8x128xf32>
    %cst_1 = arith.constant dense<0xFF800000> : vector<8xf32>
    %4 = vector.multi_reduction <maximumf>, %0, %cst_1 [1] : vector<8x16xf32> to vector<8xf32>
    %5 = vector.shape_cast %4 : vector<8xf32> to vector<8x1xf32>
    %c0_i32 = arith.constant 0 : i32
    %6 = vector.broadcast %c0_i32 : i32 to vector<8x128xi32>
    %7 = arith.cmpi eq, %2, %6 : vector<8x128xi32>
    %8 = vector.shape_cast %5 : vector<8x1xf32> to vector<8x1xf32>
    %9 = vector.broadcast %8 : vector<8x1xf32> to vector<8x128xf32>
    %10 = arith.select %7, %9, %3 : vector<8x128xi1>, vector<8x128xf32>
    %11 = vector.broadcast %5 : vector<8x1xf32> to vector<8x16xf32>
    %12 = arith.cmpf oeq, %0, %11 : vector<8x16xf32>
    %c16_i32 = arith.constant 16 : i32
    %13 = vector.broadcast %c16_i32 : i32 to vector<8x16xi32>
    %14 = arith.select %12, %1, %13 : vector<8x16xi1>, vector<8x16xi32>
    %cst_2 = arith.constant dense<2147483647> : vector<8xi32>
    %15 = vector.multi_reduction <minsi>, %14, %cst_2 [1] : vector<8x16xi32> to vector<8xi32>
    %16 = vector.shape_cast %15 : vector<8xi32> to vector<8x1xi32>
    %17 = vector.broadcast %16 : vector<8x1xi32> to vector<8x16xi32>
    %18 = arith.cmpi eq, %1, %17 : vector<8x16xi32>
    %cst_3 = arith.constant 0xFF800000 : f32
    %19 = vector.broadcast %cst_3 : f32 to vector<8x16xf32>
    %20 = arith.select %18, %19, %0 : vector<8x16xi1>, vector<8x16xf32>
    %cst_4 = arith.constant dense<0xFF800000> : vector<8xf32>
    %21 = vector.multi_reduction <maximumf>, %20, %cst_4 [1] : vector<8x16xf32> to vector<8xf32>
    %22 = vector.shape_cast %21 : vector<8xf32> to vector<8x1xf32>
    %c1_i32 = arith.constant 1 : i32
    %23 = vector.broadcast %c1_i32 : i32 to vector<8x128xi32>
    %24 = arith.cmpi eq, %2, %23 : vector<8x128xi32>
    %25 = vector.shape_cast %22 : vector<8x1xf32> to vector<8x1xf32>
    %26 = vector.broadcast %25 : vector<8x1xf32> to vector<8x128xf32>
    %27 = arith.select %24, %26, %10 : vector<8x128xi1>, vector<8x128xf32>
    %28 = vector.broadcast %22 : vector<8x1xf32> to vector<8x16xf32>
    %29 = arith.cmpf oeq, %20, %28 : vector<8x16xf32>
    %c16_i32_5 = arith.constant 16 : i32
    %30 = vector.broadcast %c16_i32_5 : i32 to vector<8x16xi32>
    %31 = arith.select %29, %1, %30 : vector<8x16xi1>, vector<8x16xi32>
    %cst_6 = arith.constant dense<2147483647> : vector<8xi32>
    %32 = vector.multi_reduction <minsi>, %31, %cst_6 [1] : vector<8x16xi32> to vector<8xi32>
    %33 = vector.shape_cast %32 : vector<8xi32> to vector<8x1xi32>
    %34 = vector.broadcast %33 : vector<8x1xi32> to vector<8x16xi32>
    %35 = arith.cmpi eq, %1, %34 : vector<8x16xi32>
    %cst_7 = arith.constant 0xFF800000 : f32
    %36 = vector.broadcast %cst_7 : f32 to vector<8x16xf32>
    %37 = arith.select %35, %36, %20 : vector<8x16xi1>, vector<8x16xf32>
    %cst_8 = arith.constant dense<0xFF800000> : vector<8xf32>
    %38 = vector.multi_reduction <maximumf>, %37, %cst_8 [1] : vector<8x16xf32> to vector<8xf32>
    %39 = vector.shape_cast %38 : vector<8xf32> to vector<8x1xf32>
    %c2_i32 = arith.constant 2 : i32
    %40 = vector.broadcast %c2_i32 : i32 to vector<8x128xi32>
    %41 = arith.cmpi eq, %2, %40 : vector<8x128xi32>
    %42 = vector.shape_cast %39 : vector<8x1xf32> to vector<8x1xf32>
    %43 = vector.broadcast %42 : vector<8x1xf32> to vector<8x128xf32>
    %44 = arith.select %41, %43, %27 : vector<8x128xi1>, vector<8x128xf32>
    %45 = vector.broadcast %39 : vector<8x1xf32> to vector<8x16xf32>
    %46 = arith.cmpf oeq, %37, %45 : vector<8x16xf32>
    %c16_i32_9 = arith.constant 16 : i32
    %47 = vector.broadcast %c16_i32_9 : i32 to vector<8x16xi32>
    %48 = arith.select %46, %1, %47 : vector<8x16xi1>, vector<8x16xi32>
    %cst_10 = arith.constant dense<2147483647> : vector<8xi32>
    %49 = vector.multi_reduction <minsi>, %48, %cst_10 [1] : vector<8x16xi32> to vector<8xi32>
    %50 = vector.shape_cast %49 : vector<8xi32> to vector<8x1xi32>
    %51 = vector.broadcast %50 : vector<8x1xi32> to vector<8x16xi32>
    %52 = arith.cmpi eq, %1, %51 : vector<8x16xi32>
    %cst_11 = arith.constant 0xFF800000 : f32
    %53 = vector.broadcast %cst_11 : f32 to vector<8x16xf32>
    %54 = arith.select %52, %53, %37 : vector<8x16xi1>, vector<8x16xf32>
    %cst_12 = arith.constant dense<0xFF800000> : vector<8xf32>
    %55 = vector.multi_reduction <maximumf>, %54, %cst_12 [1] : vector<8x16xf32> to vector<8xf32>
    %56 = vector.shape_cast %55 : vector<8xf32> to vector<8x1xf32>
    %c3_i32 = arith.constant 3 : i32
    %57 = vector.broadcast %c3_i32 : i32 to vector<8x128xi32>
    %58 = arith.cmpi eq, %2, %57 : vector<8x128xi32>
    %59 = vector.shape_cast %56 : vector<8x1xf32> to vector<8x1xf32>
    %60 = vector.broadcast %59 : vector<8x1xf32> to vector<8x128xf32>
    %61 = arith.select %58, %60, %44 : vector<8x128xi1>, vector<8x128xf32>
    %c0_13 = arith.constant 0 : index
    %c0_14 = arith.constant 0 : index
    %62 = vector.load %arg2[%c0_13, %c0_14] : memref<8x128xf32, #tpu.memory_space<vmem>>, vector<8x128xf32>
    tpu.vector_store %arg2[%c0_13, %c0_14], %61 {strides = array<i32>} : memref<8x128xf32, #tpu.memory_space<vmem>>, vector<8x128xf32>,
    return
  }
  func.func @transform_0(%arg0: i32) -> (i32, i32) {
    %c0_i32 = arith.constant 0 : i32
    %c0_i32_0 = arith.constant 0 : i32
    return %arg0, %c0_i32 : i32, i32
  }
  func.func @transform_1(%arg0: i32) -> (i32, i32) {
    %c0_i32 = arith.constant 0 : i32
    %c0_i32_0 = arith.constant 0 : i32
    return %arg0, %c0_i32 : i32, i32
  }
}

</mosaic_0001>

<llo_original>
// kernel: tpu_custom_call.1
$region0: #{tpu_custom_call.1}
  #allocation0 [shape = 'u32[]', space=smem, size = 0x4, offset = 0x4, fixed_abs, tag = 'smem constant byte address 0x4 - core index']
  #allocation1 [shape = 'u32[144,128]{1,0:T(1,128)}', space=vmem, size = 0x12000, scoped, tag = 'internal scratch']
  %s0 = inlined_call_operand.hbm [shape: f32[8,16], index: 0, kind: input, shape index: {}]
  %s1 = inlined_call_operand.hbm [shape: f32[8,128], index: 1, kind: output, shape index: {}]
  %s2 = sld [smem:[#allocation0]]
  $region18: #{tpu_custom_call.1} parent=0
    _
  %s4 = ssub.s32 1, %s2
  %s5 = scalar_select 0, %s4, %s2
  $region1: #{tpu_custom_call.1} parent=0
    #allocation2 [shape = 'u8[4096]{0}', space=vmem, size = 0x1000, scoped, tag = 'input window, operand 0, single buffered']
    #allocation3 [shape = 's32[1]{0}', space=sflag, size = 0x4, scoped, tag = 'scoped memory for tpu_custom_call.1']
    #allocation4 [shape = 's32[1]{0}', space=sflag, size = 0x4, scoped, tag = 'scoped memory for tpu_custom_call.1']
    #allocation5 [shape = 'u8[4096]{0}', space=vmem, size = 0x1000, scoped, tag = 'output window, operand 0, single buffered']
    %6 = vsyncpa [#allocation3], 0
    %7 = vsyncpa [#allocation4], 0
    // Predicated region
    $region2: #{tpu_custom_call.1} parent=1 // pred_check
      _
    $region3: #{tpu_custom_call.1} parent=1 // pred_check_branch
      %9 = sbr.rel (0) target = $region5
    $region4: #{tpu_custom_call.1} parent=1 // pred_region
      %s11 = ssub.s32 128, 128
      %12 = vsyncadd [#allocation3], %s11
      %s14 = sshll.u32 [#allocation2], 4
      %s15 = int_to_ptr.vmem [resolvable:$true] %s14
      %17 = dma.hbm_to_vmem [thread:$0]  %s0, 128, %s15, [#allocation3]
    $region5: #{tpu_custom_call.1} parent=1 // pred_fallthru
      _
    // Predicated region
    $region6: #{tpu_custom_call.1} parent=1 // pred_check
      _
    $region7: #{tpu_custom_call.1} parent=1 // pred_check_branch
      %19 = sbr.rel (0) target = $region9
    $region8: #{tpu_custom_call.1} parent=1 // pred_region
      %20 = dma.done [#allocation3], 128
    $region9: #{tpu_custom_call.1} parent=1 // pred_fallthru
      _
    %v21 = vld [vmem:[#allocation2] sm:$0xff]
    %v22 = vlaneseq
    %v23 = vand.u32 %v22, 127
    %vm24 = vcmask 130048
    %v25 = vsel %vm24, %v21, -inf
    %26 = vmax.xlane.f32.xlu0 %v25
    %v27 = vpop.xlane.xlu0 %26
    %vm28 = vcmp.eq.s32.totalorder %v23, 0
    %v29 = vsel %vm28, %v27, 0.0
    %vm30 = vcmp.eq.f32.partialorder %v21, %v27
    %v31 = vsel %vm30, %v23, 16
    %v32 = vsel %vm24, %v31, 2147483647
    %v33 = vand.u32 %v32, 65535
    %v34 = vshra.s32 %v32, 16
    %v35 = vcvt.s32.f32 %v33
    %v36 = vcvt.s32.f32 %v34
    %37 = vmin.xlane.f32.xlu0 %v36
    %v38 = vpop.xlane.xlu0 %37
    %vm39 = vcmp.eq.f32.partialorder %v36, %v38
    %v40 = vsel %vm39, %v35, inf
    %41 = vmin.xlane.f32.xlu0 %v40
    %v42 = vpop.xlane.xlu0 %41
    %v43 = vcvt.f32.s32 %v42
    %v44 = vcvt.f32.s32 %v38
    %v45 = vshll.u32 %v44, 16
    %v46 = vadd.s32 %v45, %v43
    %vm47 = vcmp.eq.s32.totalorder %v23, %v46
    %v48 = vsel %vm47, -inf, %v21
    %v49 = vsel %vm24, %v48, -inf
    %50 = vmax.xlane.f32.xlu0 %v49
    %v51 = vpop.xlane.xlu0 %50
    %vm52 = vcmp.eq.s32.totalorder %v23, 1
    %v53 = vsel %vm52, %v51, %v29
    %vm54 = vcmp.eq.f32.partialorder %v48, %v51
    %v55 = vsel %vm54, %v23, 16
    %v56 = vsel %vm24, %v55, 2147483647
    %v57 = vand.u32 %v56, 65535
    %v58 = vshra.s32 %v56, 16
    %v59 = vcvt.s32.f32 %v57
    %v60 = vcvt.s32.f32 %v58
    %61 = vmin.xlane.f32.xlu0 %v60
    %v62 = vpop.xlane.xlu0 %61
    %vm63 = vcmp.eq.f32.partialorder %v60, %v62
    %v64 = vsel %vm63, %v59, inf
    %65 = vmin.xlane.f32.xlu0 %v64
    %v66 = vpop.xlane.xlu0 %65
    %v67 = vcvt.f32.s32 %v66
    %v68 = vcvt.f32.s32 %v62
    %v69 = vshll.u32 %v68, 16
    %v70 = vadd.s32 %v69, %v67
    %vm71 = vcmp.eq.s32.totalorder %v23, %v70
    %v72 = vsel %vm71, -inf, %v48
    %v73 = vsel %vm24, %v72, -inf
    %74 = vmax.xlane.f32.xlu0 %v73
    %v75 = vpop.xlane.xlu0 %74
    %vm76 = vcmp.eq.s32.totalorder %v23, 2
    %v77 = vsel %vm76, %v75, %v53
    %vm78 = vcmp.eq.f32.partialorder %v72, %v75
    %v79 = vsel %vm78, %v23, 16
    %v80 = vsel %vm24, %v79, 2147483647
    %v81 = vand.u32 %v80, 65535
    %v82 = vshra.s32 %v80, 16
    %v83 = vcvt.s32.f32 %v81
    %v84 = vcvt.s32.f32 %v82
    %85 = vmin.xlane.f32.xlu0 %v84
    %v86 = vpop.xlane.xlu0 %85
    %vm87 = vcmp.eq.f32.partialorder %v84, %v86
    %v88 = vsel %vm87, %v83, inf
    %89 = vmin.xlane.f32.xlu0 %v88
    %v90 = vpop.xlane.xlu0 %89
    %v91 = vcvt.f32.s32 %v90
    %v92 = vcvt.f32.s32 %v86
    %v93 = vshll.u32 %v92, 16
    %v94 = vadd.s32 %v93, %v91
    %vm95 = vcmp.eq.s32.totalorder %v23, %v94
    %v96 = vsel %vm95, -inf, %v72
    %v97 = vsel %vm24, %v96, -inf
    %98 = vmax.xlane.f32.xlu0 %v97
    %v99 = vpop.xlane.xlu0 %98
    %vm100 = vcmp.eq.s32.totalorder %v23, 3
    %v101 = vsel %vm100, %v99, %v77
    %102 = vst [vmem:[#allocation5] sm:$0xff] %v101
    // Predicated region
    $region10: #{tpu_custom_call.1} parent=1 // pred_check
      _
    $region11: #{tpu_custom_call.1} parent=1 // pred_check_branch
      %104 = sbr.rel (0) target = $region13
    $region12: #{tpu_custom_call.1} parent=1 // pred_region
      %s106 = ssub.s32 128, 128
      %107 = vsyncadd [#allocation4], %s106
      %s109 = sshll.u32 [#allocation5], 4
      %s110 = int_to_ptr.vmem [resolvable:$true] %s109
      %112 = dma.vmem_to_hbm [thread:$0]  %s110, 128, %s1, [#allocation4]
    $region13: #{tpu_custom_call.1} parent=1 // pred_fallthru
      _
    // Predicated region
    $region14: #{tpu_custom_call.1} parent=1 // pred_check
      _
    $region15: #{tpu_custom_call.1} parent=1 // pred_check_branch
      %114 = sbr.rel (0) target = $region17
    $region16: #{tpu_custom_call.1} parent=1 // pred_region
      %115 = dma.done [#allocation4], 128
    $region17: #{tpu_custom_call.1} parent=1 // pred_fallthru
      _
    %116 = vsyncpa [#allocation3], 1
    %117 = vsyncpa [#allocation4], 1

</llo_original>
